<compile_context>
chip_gen: v5e
topology: v5e:2x2
jax: 0.10.0
libtpu: 0.0.40
codegen_flags: <defaults>
</compile_context>

<pallas_src>
import functools

import jax
import jax.numpy as jnp
from jax import lax
from jax.experimental import pallas as pl
from jax.experimental.pallas import tpu as pltpu


def _lora_kernel(x_ref, w_ref, a_ref, b_ref, o_ref, *scratch, scaling, nk):
    # x_ref: (bm, bk)   w_ref: (bn, bk)   a_ref: (bn, r)   b_ref: (r, bk)
    # scratch (only when nk > 1): acc_ref (bm, bn) f32, t_ref (bm, r) f32
    contract_last = (((1,), (1,)), ((), ()))  # contract last dims, no transpose

    x = x_ref[...]
    # Main GEMM partial: x_blk @ W_blk.T -> (bm, bn), f32 accumulate on MXU.
    p = lax.dot_general(x, w_ref[...], contract_last,
                        preferred_element_type=jnp.float32)
    # LoRA reduction partial: x_blk @ B_blk.T -> (bm, rank).
    t = lax.dot_general(x, b_ref[...], contract_last,
                        preferred_element_type=jnp.float32)

    if nk == 1:
        # Single K step: no accumulator scratch round trip needed.
        lora = lax.dot_general(t * scaling, a_ref[...], contract_last,
                               preferred_element_type=jnp.float32)
        o_ref[...] = (p + lora).astype(o_ref.dtype)
        return

    acc_ref, t_ref = scratch
    k = pl.program_id(2)

    @pl.when(k == 0)
    def _():
        acc_ref[...] = p
        t_ref[...] = t

    @pl.when(k > 0)
    def _():
        acc_ref[...] += p
        t_ref[...] += t

    @pl.when(k == nk - 1)
    def _():
        # Epilogue: rank->bn expansion of the accumulated t, scaled once.
        lora = lax.dot_general(t_ref[...] * scaling, a_ref[...], contract_last,
                               preferred_element_type=jnp.float32)
        o_ref[...] = (acc_ref[...] + lora).astype(o_ref.dtype)


def _pick_block(block, dim, align):
    """Largest divisor of `dim` that is <= `block` and a multiple of `align`.

    Never silently falls back to the full dim for merely non-divisible dims;
    full dim is only used when dim <= block or no aligned divisor exists.
    """
    if dim <= block:
        return dim
    best = 0
    for cand in range(align, block + 1, align):
        if dim % cand == 0:
            best = cand
    if best:
        return best
    # TODO(synk): pathological dims (no 8/128-aligned divisor <= block) still
    # fall back to the full dimension; masked partial tiles would avoid it.
    return dim


def lora_forward(x, weight, A, B, *, alpha=1.0, rank=None,
                 block_m=512, block_n=512, block_k=1024,
                 preserve_float32=True,
                 vmem_limit_bytes=48 * 1024 * 1024):
    """x: (M, in_features) -> (M, out_features) float32."""
    if rank is None:
        rank = A.shape[1]
    scaling = float(alpha) / float(rank)

    if preserve_float32:
        # Matches the PyTorch `.float()` contract. Set preserve_float32=False
        # to keep native (e.g. bf16) operands -> ~2x less HBM traffic and
        # MXU-native rate, with f32 accumulation (relaxed semantics).
        x = x.astype(jnp.float32)
        weight = weight.astype(jnp.float32)
        A = A.astype(jnp.float32)
        B = B.astype(jnp.float32)

    M, K = x.shape
    N, Kw = weight.shape
    assert Kw == K and A.shape == (N, rank) and B.shape == (rank, K)

    bm = _pick_block(block_m, M, 8)
    bn = _pick_block(block_n, N, 128)
    bk = _pick_block(block_k, K, 128)

    # Megacore (v7x, 2 TCs): if both parallel axes collapse to a single block,
    # split N so the second core is not idle.
    if (M // bm) == 1 and (N // bn) == 1:
        half = bn // 2
        if half >= 128 and half % 128 == 0 and N % half == 0:
            bn = half

    grid = (pl.cdiv(M, bm), pl.cdiv(N, bn), pl.cdiv(K, bk))
    nk = grid[2]

    scratch_shapes = []
    if nk > 1:
        scratch_shapes = [
            pltpu.VMEM((bm, bn), jnp.float32),    # main accumulator
            pltpu.VMEM((bm, rank), jnp.float32),  # t = x @ B.T accumulator
        ]

    kernel = functools.partial(_lora_kernel, scaling=scaling, nk=nk)

    return pl.pallas_call(
        kernel,
        out_shape=jax.ShapeDtypeStruct((M, N), jnp.float32),
        grid_spec=pltpu.PrefetchScalarGridSpec(
            num_scalar_prefetch=0,
            grid=grid,
            in_specs=[
                pl.BlockSpec((bm, bk), lambda i, j, k: (i, k)),      # x
                pl.BlockSpec((bn, bk), lambda i, j, k: (j, k)),      # W (N, K)
                pl.BlockSpec((bn, rank), lambda i, j, k: (j, 0)),    # A (N, r)
                pl.BlockSpec((rank, bk), lambda i, j, k: (0, k)),    # B (r, K)
            ],
            out_specs=pl.BlockSpec((bm, bn), lambda i, j, k: (i, j)),
            scratch_shapes=scratch_shapes,
        ),
        compiler_params=pltpu.CompilerParams(
            dimension_semantics=("parallel", "parallel", "arbitrary"),
            vmem_limit_bytes=vmem_limit_bytes,
        ),
    )(x, weight, A, B)


def _reference(x, weight, A, B, alpha, rank):
    hi = lax.Precision.HIGHEST
    delta_w = jnp.dot(A, B, precision=hi) * (alpha / rank)
    return jnp.dot(x, (weight + delta_w).T, precision=hi)


if __name__ == "__main__":
    key = jax.random.PRNGKey(0)

    # --- Test 1: small shapes (single grid step, epilogue-only path) ---
    M, in_f, out_f, rank, alpha = 16, 32, 32, 4, 1.0
    k_x, k_w, k_a, k_b, key = jax.random.split(key, 5)
    x = jax.random.normal(k_x, (M, in_f), dtype=jnp.float32)
    w = jax.random.normal(k_w, (out_f, in_f), dtype=jnp.float32)
    A = jax.random.normal(k_a, (out_f, rank), dtype=jnp.float32) * 0.001
    B = jax.random.normal(k_b, (rank, in_f), dtype=jnp.float32) * 0.001

    y = jax.block_until_ready(lora_forward(x, w, A, B, alpha=alpha, rank=rank))
    y_ref = _reference(x, w, A, B, alpha, rank)
    assert jnp.allclose(y, y_ref, atol=1e-4, rtol=1e-4), "mismatch (test 1)"

    # --- Test 2: modest shapes forcing a (2, 3, 4) grid (K-accumulation path) ---
    M2, in2, out2, rank2, alpha2 = 64, 512, 384, 8, 2.0
    k_x, k_w, k_a, k_b, key = jax.random.split(key, 5)
    x2 = jax.random.normal(k_x, (M2, in2), dtype=jnp.float32)
    w2 = jax.random.normal(k_w, (out2, in2), dtype=jnp.float32)
    A2 = jax.random.normal(k_a, (out2, rank2), dtype=jnp.float32) * 0.001
    B2 = jax.random.normal(k_b, (rank2, in2), dtype=jnp.float32) * 0.001

    y2 = jax.block_until_ready(
        lora_forward(x2, w2, A2, B2, alpha=alpha2, rank=rank2,
                     block_m=32, block_n=128, block_k=128))
    y2_ref = _reference(x2, w2, A2, B2, alpha2, rank2)
    assert jnp.allclose(y2, y2_ref, atol=2e-3, rtol=2e-3), "mismatch (test 2)"

    print("KERNEL_OK")
</pallas_src>

<mosaic_0001>
module attributes {stable_mosaic.version = 11 : i64} {
  func.func @_lora_kernel(%arg0: i32, %arg1: i32, %arg2: i32, %arg3: memref<16x32xf32, #tpu.memory_space<vmem>>, %arg4: memref<32x32xf32, #tpu.memory_space<vmem>>, %arg5: memref<32x4xf32, #tpu.memory_space<vmem>>, %arg6: memref<4x32xf32, #tpu.memory_space<vmem>>, %arg7: memref<16x32xf32, #tpu.memory_space<vmem>>) attributes {dimension_semantics = [#tpu.dimension_semantics<parallel>, #tpu.dimension_semantics<parallel>, #tpu.dimension_semantics<arbitrary>], iteration_bounds = array<i64: 1, 1, 1>, scalar_prefetch = 0 : i64, scratch_operands = 0 : i64, tpu.core_type = #tpu.core_type<tc>, window_params = [{transform_indices = @transform_0, window_bounds = array<i64: 16, 32>}, {transform_indices = @transform_1, window_bounds = array<i64: 32, 32>}, {transform_indices = @transform_2, window_bounds = array<i64: 32, 4>}, {transform_indices = @transform_3, window_bounds = array<i64: 4, 32>}, {transform_indices = @transform_4, window_bounds = array<i64: 16, 32>}]} {
    %c0 = arith.constant 0 : index
    %c0_0 = arith.constant 0 : index
    %0 = vector.load %arg3[%c0, %c0_0] : memref<16x32xf32, #tpu.memory_space<vmem>>, vector<16x32xf32>
    %c0_1 = arith.constant 0 : index
    %c0_2 = arith.constant 0 : index
    %1 = vector.load %arg4[%c0_1, %c0_2] : memref<32x32xf32, #tpu.memory_space<vmem>>, vector<32x32xf32>
    %cst = arith.constant dense<0.000000e+00> : vector<16x32xf32>
    %2 = tpu.matmul %0, %1, %cst {dimension_numbers = #tpu.dot_dimension_numbers<[1], [1], [0], [0], [0, 0, 1, 0], [], []>} : vector<16x32xf32>, vector<32x32xf32>, vector<16x32xf32> -> vector<16x32xf32>
    %c0_3 = arith.constant 0 : index
    %c0_4 = arith.constant 0 : index
    %3 = vector.load %arg6[%c0_3, %c0_4] : memref<4x32xf32, #tpu.memory_space<vmem>>, vector<4x32xf32>
    %cst_5 = arith.constant dense<0.000000e+00> : vector<16x4xf32>
    %4 = tpu.matmul %0, %3, %cst_5 {dimension_numbers = #tpu.dot_dimension_numbers<[1], [1], [0], [0], [0, 0, 1, 0], [], []>} : vector<16x32xf32>, vector<4x32xf32>, vector<16x4xf32> -> vector<16x4xf32>
    %cst_6 = arith.constant 2.500000e-01 : f32
    %5 = vector.broadcast %cst_6 : f32 to vector<16x4xf32>
    %6 = arith.mulf %4, %5 : vector<16x4xf32>
    %c0_7 = arith.constant 0 : index
    %c0_8 = arith.constant 0 : index
    %7 = vector.load %arg5[%c0_7, %c0_8] : memref<32x4xf32, #tpu.memory_space<vmem>>, vector<32x4xf32>
    %cst_9 = arith.constant dense<0.000000e+00> : vector<16x32xf32>
    %8 = tpu.matmul %6, %7, %cst_9 {dimension_numbers = #tpu.dot_dimension_numbers<[1], [1], [0], [0], [0, 0, 1, 0], [], []>} : vector<16x4xf32>, vector<32x4xf32>, vector<16x32xf32> -> vector<16x32xf32>
    %9 = arith.addf %2, %8 : vector<16x32xf32>
    %c0_10 = arith.constant 0 : index
    %c0_11 = arith.constant 0 : index
    %10 = vector.load %arg7[%c0_10, %c0_11] : memref<16x32xf32, #tpu.memory_space<vmem>>, vector<16x32xf32>
    tpu.vector_store %arg7[%c0_10, %c0_11], %9 {strides = array<i32>} : memref<16x32xf32, #tpu.memory_space<vmem>>, vector<16x32xf32>,
    return
  }
  func.func @transform_0(%arg0: i32, %arg1: i32, %arg2: i32) -> (i32, i32) {
    %c0_i32 = arith.constant 0 : i32
    return %arg0, %arg2 : i32, i32
  }
  func.func @transform_1(%arg0: i32, %arg1: i32, %arg2: i32) -> (i32, i32) {
    %c0_i32 = arith.constant 0 : i32
    return %arg1, %arg2 : i32, i32
  }
  func.func @transform_2(%arg0: i32, %arg1: i32, %arg2: i32) -> (i32, i32) {
    %c0_i32 = arith.constant 0 : i32
    %c0_i32_0 = arith.constant 0 : i32
    return %arg1, %c0_i32 : i32, i32
  }
  func.func @transform_3(%arg0: i32, %arg1: i32, %arg2: i32) -> (i32, i32) {
    %c0_i32 = arith.constant 0 : i32
    %c0_i32_0 = arith.constant 0 : i32
    return %c0_i32, %arg2 : i32, i32
  }
  func.func @transform_4(%arg0: i32, %arg1: i32, %arg2: i32) -> (i32, i32) {
    %c0_i32 = arith.constant 0 : i32
    return %arg0, %arg1 : i32, i32
  }
}

</mosaic_0001>

<llo_original>
// kernel: tpu_custom_call.1
$region0: #{tpu_custom_call.1}
  #allocation0 [shape = 'u32[]', space=smem, size = 0x4, offset = 0x4, fixed_abs, tag = 'smem constant byte address 0x4 - core index']
  #allocation1 [shape = 'u32[72,128]{1,0:T(1,128)}', space=vmem, size = 0x9000, scoped, tag = 'internal scratch']
  %s0 = inlined_call_operand.hbm [shape: f32[16,32], index: 0, kind: input, shape index: {}]
  %s1 = inlined_call_operand.vmem [shape: f32[32,32], index: 1, kind: input, shape index: {}]
  %s2 = inlined_call_operand.vmem [shape: f32[32,4], index: 2, kind: input, shape index: {}]
  %s3 = inlined_call_operand.vmem [shape: f32[4,32], index: 3, kind: input, shape index: {}]
  %s4 = inlined_call_operand.hbm [shape: f32[16,32], index: 4, kind: output, shape index: {}]
  %s5 = sld [smem:[#allocation0]]
  $region30: #{tpu_custom_call.1} parent=0
    _
  %s7 = ssub.s32 1, %s5
  %s8 = scalar_select 0, %s7, %s5
  $region1: #{tpu_custom_call.1} parent=0
    #allocation2 [shape = 'u8[8192]{0}', space=vmem, size = 0x2000, scoped, tag = 'input window, operand 0, single buffered']
    #allocation3 [shape = 's32[1]{0}', space=sflag, size = 0x4, scoped, tag = 'scoped memory for tpu_custom_call.1']
    #allocation4 [shape = 's32[1]{0}', space=sflag, size = 0x4, scoped, tag = 'scoped memory for tpu_custom_call.1']
    #allocation5 [shape = 'u8[8192]{0}', space=vmem, size = 0x2000, scoped, tag = 'output window, operand 0, single buffered']
    %9 = vsyncpa [#allocation3], 0
    %10 = vsyncpa [#allocation4], 0
    // Predicated region
    $region2: #{tpu_custom_call.1} parent=1 // pred_check
      _
    $region3: #{tpu_custom_call.1} parent=1 // pred_check_branch
      %12 = sbr.rel (0) target = $region5
    $region4: #{tpu_custom_call.1} parent=1 // pred_region
      %14 = vsyncadd [#allocation3], 0
      %s15 = sshll.u32 %s0, 4
      %s16 = int_to_ptr.hbm [resolvable:$true] %s15
      %s17 = sshll.u32 [#allocation2], 4
      %s18 = int_to_ptr.vmem [resolvable:$true] %s17
      %23 = dma.hbm_to_vmem [thread:$0]  %s16, 256, %s18, [#allocation3], 128, 128, 8
    $region5: #{tpu_custom_call.1} parent=1 // pred_fallthru
      _
    // Predicated region
    $region6: #{tpu_custom_call.1} parent=1 // pred_check
      _
    $region7: #{tpu_custom_call.1} parent=1 // pred_check_branch
      %25 = sbr.rel (0) target = $region9
    $region8: #{tpu_custom_call.1} parent=1 // pred_region
      _
    $region9: #{tpu_custom_call.1} parent=1 // pred_fallthru
      _
    // Predicated region
    $region10: #{tpu_custom_call.1} parent=1 // pred_check
      _
    $region11: #{tpu_custom_call.1} parent=1 // pred_check_branch
      %27 = sbr.rel (0) target = $region13
    $region12: #{tpu_custom_call.1} parent=1 // pred_region
      _
    $region13: #{tpu_custom_call.1} parent=1 // pred_fallthru
      _
    // Predicated region
    $region14: #{tpu_custom_call.1} parent=1 // pred_check
      _
    $region15: #{tpu_custom_call.1} parent=1 // pred_check_branch
      %29 = sbr.rel (0) target = $region17
    $region16: #{tpu_custom_call.1} parent=1 // pred_region
      _
    $region17: #{tpu_custom_call.1} parent=1 // pred_fallthru
      _
    // Predicated region
    $region18: #{tpu_custom_call.1} parent=1 // pred_check
      _
    $region19: #{tpu_custom_call.1} parent=1 // pred_check_branch
      %31 = sbr.rel (0) target = $region21
    $region20: #{tpu_custom_call.1} parent=1 // pred_region
      %33 = dma.done [#allocation3], 256
    $region21: #{tpu_custom_call.1} parent=1 // pred_fallthru
      _
    %v34 = vld [vmem:[#allocation2] sm:$0xff]
    %v35 = vld [vmem:[#allocation2 + $0x8] sm:$0xff]
    %v36 = vld [vmem:[%s1] sm:$0xff]
    %v37 = vld [vmem:[%s1 + $0x8] sm:$0xff]
    %v38 = vld [vmem:[%s1 + $0x10] sm:$0xff]
    %v39 = vld [vmem:[%s1 + $0x18] sm:$0xff]
    %v40 = vld [vmem:[%s3] sm:$0xf]
    %vm41 = vcmask 261120
    %v43 = vsel %vm41, %v34, 0
    %v46 = vsel %vm41, %v35, 0
    %v49 = vsel %vm41, %v40, 0
    %51 = vmatpush.xpose.msra.mxu0 0.0
    %52 = vmatpush.xpose.msra.mxu0 0.0
    %53 = vmatpush.xpose.msra.mxu0 0.0
    %54 = vmatpush.xpose.msra.mxu0 0.0
    %55 = vmatpush.xpose.msra.mxu0 0.0
    %56 = vmatpush.xpose.msra.mxu0 0.0
    %57 = vmatpush.xpose.msra.mxu0 0.0
    %58 = vmatpush.xpose.msra.mxu0 0.0
    %59 = vmatpush.xpose.msra.mxu0 0.0
    %60 = vmatpush.xpose.msra.mxu0 0.0
    %61 = vmatpush.xpose.msra.mxu0 0.0
    %62 = vmatpush.xpose.msra.mxu0 0.0
    %63 = vmatpush.xpose.msra.mxu0 0.0
    %64 = vmatpush.xpose.msra.mxu0 0.0
    %65 = vmatpush.xpose.msra.mxu0 0.0
    %66 = vmatpush.xpose.msra.mxu0 %v49
    %67 = vmatmul.f32.gmra.mxu0 %v43
    %v68 = vpop.f32.mrf.mxu0
    %v69 = vadd.f32 0.0, %v68
    %70 = vmatmul.f32.gmra.mxu0 %v46
    %v71 = vpop.f32.mrf.mxu0
    %v72 = vadd.f32 0.0, %v71
    %73 = vdwg.mxu0
    %v74 = vmul.f32 %v69, 0.25
    %v75 = vmul.f32 %v72, 0.25
    %v76 = vld [vmem:[%s2] sm:$0xff]
    %v77 = vld [vmem:[%s2 + $0x8] sm:$0xff]
    %v78 = vld [vmem:[%s2 + $0x10] sm:$0xff]
    %v79 = vld [vmem:[%s2 + $0x18] sm:$0xff]
    %vm80 = vcmask 31744
    %v82 = vsel %vm80, %v74, 0
    %v85 = vsel %vm80, %v75, 0
    %v88 = vsel %vm80, %v76, 0
    %v91 = vsel %vm80, %v77, 0
    %v94 = vsel %vm80, %v78, 0
    %v97 = vsel %vm80, %v79, 0
    %99 = vmatpush.xpose.msra.mxu0 0.0
    %100 = vmatpush.xpose.msra.mxu0 0.0
    %101 = vmatpush.xpose.msra.mxu0 0.0
    %102 = vmatpush.xpose.msra.mxu0 0.0
    %103 = vmatpush.xpose.msra.mxu0 0.0
    %104 = vmatpush.xpose.msra.mxu0 0.0
    %105 = vmatpush.xpose.msra.mxu0 0.0
    %106 = vmatpush.xpose.msra.mxu0 0.0
    %107 = vmatpush.xpose.msra.mxu0 0.0
    %108 = vmatpush.xpose.msra.mxu0 0.0
    %109 = vmatpush.xpose.msra.mxu0 0.0
    %110 = vmatpush.xpose.msra.mxu0 0.0
    %111 = vmatpush.xpose.msra.mxu0 %v97
    %112 = vmatpush.xpose.msra.mxu0 %v94
    %113 = vmatpush.xpose.msra.mxu0 %v91
    %114 = vmatpush.xpose.msra.mxu0 %v88
    %115 = vmatmul.f32.gmra.mxu0 %v82
    %v116 = vpop.f32.mrf.mxu0
    %v117 = vadd.f32 0.0, %v116
    %118 = vmatmul.f32.gmra.mxu0 %v85
    %v119 = vpop.f32.mrf.mxu0
    %v120 = vadd.f32 0.0, %v119
    %121 = vdwg.mxu0
    %v123 = vsel %vm41, %v36, 0
    %v126 = vsel %vm41, %v37, 0
    %v129 = vsel %vm41, %v38, 0
    %v132 = vsel %vm41, %v39, 0
    %134 = vmatpush.xpose.msra.mxu0 0.0
    %135 = vmatpush.xpose.msra.mxu0 0.0
    %136 = vmatpush.xpose.msra.mxu0 0.0
    %137 = vmatpush.xpose.msra.mxu0 0.0
    %138 = vmatpush.xpose.msra.mxu0 0.0
    %139 = vmatpush.xpose.msra.mxu0 0.0
    %140 = vmatpush.xpose.msra.mxu0 0.0
    %141 = vmatpush.xpose.msra.mxu0 0.0
    %142 = vmatpush.xpose.msra.mxu0 0.0
    %143 = vmatpush.xpose.msra.mxu0 0.0
    %144 = vmatpush.xpose.msra.mxu0 0.0
    %145 = vmatpush.xpose.msra.mxu0 0.0
    %146 = vmatpush.xpose.msra.mxu0 %v132
    %147 = vmatpush.xpose.msra.mxu0 %v129
    %148 = vmatpush.xpose.msra.mxu0 %v126
    %149 = vmatpush.xpose.msra.mxu0 %v123
    %150 = vmatmul.f32.gmra.mxu0 %v43
    %v151 = vpop.f32.mrf.mxu0
    %v152 = vadd.f32 %v117, %v151
    %153 = vmatmul.f32.gmra.mxu0 %v46
    %v154 = vpop.f32.mrf.mxu0
    %v155 = vadd.f32 %v120, %v154
    %156 = vdwg.mxu0
    %157 = vst.msk [vmem:[#allocation5] sm:$0xff] %vm41, %v152
    %158 = vst.msk [vmem:[#allocation5 + $0x8] sm:$0xff] %vm41, %v155
    // Predicated region
    $region22: #{tpu_custom_call.1} parent=1 // pred_check
      _
    $region23: #{tpu_custom_call.1} parent=1 // pred_check_branch
      %160 = sbr.rel (0) target = $region25
    $region24: #{tpu_custom_call.1} parent=1 // pred_region
      %162 = vsyncadd [#allocation4], 0
      %s163 = sshll.u32 [#allocation5], 4
      %s164 = int_to_ptr.vmem [resolvable:$true] %s163
      %s165 = sshll.u32 %s4, 4
      %s166 = int_to_ptr.hbm [resolvable:$true] %s165
      %171 = dma.vmem_to_hbm [thread:$0]  %s164, 256, %s166, [#allocation4], 128, 128, 8
    $region25: #{tpu_custom_call.1} parent=1 // pred_fallthru
      _
    // Predicated region
    $region26: #{tpu_custom_call.1} parent=1 // pred_check
      _
    $region27: #{tpu_custom_call.1} parent=1 // pred_check_branch
      %173 = sbr.rel (0) target = $region29
    $region28: #{tpu_custom_call.1} parent=1 // pred_region
      %175 = dma.done [#allocation4], 256
    $region29: #{tpu_custom_call.1} parent=1 // pred_fallthru
      _
    %176 = vsyncpa [#allocation3], 1
    %177 = vsyncpa [#allocation4], 1

</llo_original>
